<compile_context>
chip_gen: v5e
topology: v5e:2x2
jax: 0.10.0
libtpu: 0.0.40
codegen_flags: <defaults>
</compile_context>

<pallas_src>
import jax
import jax.numpy as jnp
from jax.experimental import pallas as pl
from jax.experimental.pallas import tpu as pltpu


def _mlp_kernel(params_ref, x_ref, o_ref):
    # params_ref: (21,) f32 in SMEM, packed as
    #   [0:5]   w1[0, :]   (input feature 0 -> 5 hidden)
    #   [5:10]  w1[1, :]   (input feature 1 -> 5 hidden)
    #   [10:15] b1
    #   [15:20] w2[:, 0]
    #   [20]    b2
    # x_ref: (2, block_rows, L) f32 in VMEM  (feature, sublane-batch, lane-batch)
    # o_ref: (block_rows, L) f32 in VMEM
    x0 = x_ref[0]                      # (block_rows, L), fully dense vregs
    x1 = x_ref[1]                      # (block_rows, L)

    y = jnp.zeros_like(x0)
    # Fully unrolled over the 5 hidden units: pure VPU FMAs + ReLU, no MXU.
    # ~36 VALU ops per 1024 elements -> memory-bound at these tile sizes.
    for j in range(5):
        h = params_ref[j] * x0 + params_ref[5 + j] * x1 + params_ref[10 + j]
        h = jnp.maximum(h, 0.0)
        y = y + params_ref[15 + j] * h
    o_ref[...] = y + params_ref[20]


def _choose_tiling(batch, lane_width, block_rows):
    """Pick (L, block_rows, R) so L%128==0, block_rows%8==0, R%block_rows==0."""
    L = max(128, lane_width)
    while L > 128 and L // 2 >= batch:          # don't over-pad tiny batches
        L //= 2
    rows_needed = -(-batch // L)                # ceil(batch / L)
    br = max(8, block_rows)
    while br > 8 and br // 2 >= rows_needed:
        br //= 2
    R = -(-rows_needed // br) * br              # pad rows to a tile multiple
    return L, br, R


def my_machine_forward(x, w1, b1, w2, b2, *, lane_width=1024, block_rows=256,
                       min_kernel_batch=0):
    """Forward pass of MyMachine. x: (B, 2) f32 -> (B, 1) f32.

    lane_width:  lane-axis batch width (multiple of 128).
    block_rows:  sublane-axis rows per grid step (multiple of 8).
                 Defaults give ~3 MB per grid step (~6.3 MB double-buffered).
    min_kernel_batch: below this batch size, fall back to plain XLA. Default 0
    so the Pallas kernel always runs (required by the test below).
    """
    B = x.shape[0]
    if B < min_kernel_batch:
        return jnp.maximum(x @ w1 + b1, 0.0) @ w2 + b2.reshape(1, 1)

    # Pack the 21 parameters into one SMEM-resident scalar vector.
    params = jnp.concatenate([
        w1[0, :].reshape(-1),
        w1[1, :].reshape(-1),
        b1.reshape(-1),
        w2.reshape(-1),
        b2.reshape(-1),
    ]).astype(jnp.float32)                                  # (21,)

    L, br, R = _choose_tiling(B, lane_width, block_rows)
    Bp = R * L

    x32 = x.astype(jnp.float32)
    if Bp != B:
        x32 = jnp.pad(x32, ((0, Bp - B), (0, 0)))           # tail-only pad
    # Single layout pass: (Bp, 2) -> (2, R, L) slab (batch dense on both the
    # sublane and lane axes; feature axis is the leading, untiled dim).
    x_slab = x32.T.reshape(2, R, L)

    y_slab = pl.pallas_call(
        _mlp_kernel,
        out_shape=jax.ShapeDtypeStruct((R, L), jnp.float32),
        grid=(R // br,),
        in_specs=[
            pl.BlockSpec(memory_space=pltpu.SMEM),           # params, untiled
            pl.BlockSpec((2, br, L), lambda i: (0, i, 0)),    # x slab tile
        ],
        out_specs=pl.BlockSpec((br, L), lambda i: (i, 0)),    # y slab tile
        compiler_params=pltpu.CompilerParams(
            dimension_semantics=("parallel",),                # v7x 2-TC shard
            vmem_limit_bytes=32 * 1024 * 1024,                # safe on v5e..v7x
        ),
        cost_estimate=pl.CostEstimate(
            flops=36 * R * L,
            transcendentals=0,
            bytes_accessed=12 * R * L + params.size * 4,
        ),
    )(params, x_slab)

    # Padded tail rows hold relu(b1)@w2 + b2 garbage; always slice before use.
    return y_slab.reshape(Bp)[:B].reshape(B, 1)


def init_params(key):
    # Mimic PyTorch nn.Linear default init: U(-1/sqrt(fan_in), 1/sqrt(fan_in)).
    k1, k2, k3, k4 = jax.random.split(key, 4)
    bound1 = 1.0 / jnp.sqrt(2.0)   # fan_in = 2
    bound2 = 1.0 / jnp.sqrt(5.0)   # fan_in = 5
    w1 = jax.random.uniform(k1, (2, 5), jnp.float32, -bound1, bound1)
    b1 = jax.random.uniform(k2, (5,), jnp.float32, -bound1, bound1)
    w2 = jax.random.uniform(k3, (5, 1), jnp.float32, -bound2, bound2)
    b2 = jax.random.uniform(k4, (1,), jnp.float32, -bound2, bound2)
    return w1, b1, w2, b2


if __name__ == "__main__":
    key = jax.random.PRNGKey(0)
    k_x, k_p = jax.random.split(key)

    B = 8
    x = jax.random.normal(k_x, (B, 2), jnp.float32)
    w1, b1, w2, b2 = init_params(k_p)

    out = my_machine_forward(x, w1, b1, w2, b2)
    out = jax.block_until_ready(out)

    # Reference check in plain JAX.
    ref = jnp.maximum(x @ w1 + b1, 0.0) @ w2 + b2.reshape(1, 1)
    assert out.shape == (B, 1)
    assert jnp.allclose(out, ref, atol=1e-5, rtol=1e-5)

    print("KERNEL_OK")
</pallas_src>

<mosaic_0001>
module attributes {stable_mosaic.version = 11 : i64} {
  func.func @_mlp_kernel(%arg0: i32, %arg1: memref<21xf32, #tpu.memory_space<smem>>, %arg2: memref<2x8x128xf32, #tpu.memory_space<vmem>>, %arg3: memref<8x128xf32, #tpu.memory_space<vmem>>) attributes {dimension_semantics = [#tpu.dimension_semantics<parallel>], iteration_bounds = array<i64: 1>, scalar_prefetch = 0 : i64, scratch_operands = 0 : i64, tpu.core_type = #tpu.core_type<tc>, window_params = [{transform_indices = @transform_0, window_bounds = array<i64: 21>}, {transform_indices = @transform_1, window_bounds = array<i64: 2, 8, 128>}, {transform_indices = @transform_2, window_bounds = array<i64: 8, 128>}]} {
    %c0 = arith.constant 0 : index
    %c0_0 = arith.constant 0 : index
    %c0_1 = arith.constant 0 : index
    %0 = vector.load %arg2[%c0, %c0_0, %c0_1] : memref<2x8x128xf32, #tpu.memory_space<vmem>>, vector<1x8x128xf32>
    %1 = vector.shape_cast %0 : vector<1x8x128xf32> to vector<8x128xf32>
    %c1 = arith.constant 1 : index
    %c0_2 = arith.constant 0 : index
    %c0_3 = arith.constant 0 : index
    %2 = vector.load %arg2[%c1, %c0_2, %c0_3] : memref<2x8x128xf32, #tpu.memory_space<vmem>>, vector<1x8x128xf32>
    %3 = vector.shape_cast %2 : vector<1x8x128xf32> to vector<8x128xf32>
    %cst = arith.constant 0.000000e+00 : f32
    %4 = vector.broadcast %cst : f32 to vector<8x128xf32>
    %c0_4 = arith.constant 0 : index
    %5 = memref.load %arg1[%c0_4] : memref<21xf32, #tpu.memory_space<smem>>
    %6 = vector.broadcast %5 : f32 to vector<8x128xf32>
    %7 = arith.mulf %6, %1 : vector<8x128xf32>
    %c5 = arith.constant 5 : index
    %8 = memref.load %arg1[%c5] : memref<21xf32, #tpu.memory_space<smem>>
    %9 = vector.broadcast %8 : f32 to vector<8x128xf32>
    %10 = arith.mulf %9, %3 : vector<8x128xf32>
    %11 = arith.addf %7, %10 : vector<8x128xf32>
    %c10 = arith.constant 10 : index
    %12 = memref.load %arg1[%c10] : memref<21xf32, #tpu.memory_space<smem>>
    %13 = vector.broadcast %12 : f32 to vector<8x128xf32>
    %14 = arith.addf %11, %13 : vector<8x128xf32>
    %cst_5 = arith.constant 0.000000e+00 : f32
    %15 = vector.broadcast %cst_5 : f32 to vector<8x128xf32>
    %16 = arith.maximumf %14, %15 : vector<8x128xf32>
    %c15 = arith.constant 15 : index
    %17 = memref.load %arg1[%c15] : memref<21xf32, #tpu.memory_space<smem>>
    %18 = vector.broadcast %17 : f32 to vector<8x128xf32>
    %19 = arith.mulf %18, %16 : vector<8x128xf32>
    %20 = arith.addf %4, %19 : vector<8x128xf32>
    %c1_6 = arith.constant 1 : index
    %21 = memref.load %arg1[%c1_6] : memref<21xf32, #tpu.memory_space<smem>>
    %22 = vector.broadcast %21 : f32 to vector<8x128xf32>
    %23 = arith.mulf %22, %1 : vector<8x128xf32>
    %c6 = arith.constant 6 : index
    %24 = memref.load %arg1[%c6] : memref<21xf32, #tpu.memory_space<smem>>
    %25 = vector.broadcast %24 : f32 to vector<8x128xf32>
    %26 = arith.mulf %25, %3 : vector<8x128xf32>
    %27 = arith.addf %23, %26 : vector<8x128xf32>
    %c11 = arith.constant 11 : index
    %28 = memref.load %arg1[%c11] : memref<21xf32, #tpu.memory_space<smem>>
    %29 = vector.broadcast %28 : f32 to vector<8x128xf32>
    %30 = arith.addf %27, %29 : vector<8x128xf32>
    %cst_7 = arith.constant 0.000000e+00 : f32
    %31 = vector.broadcast %cst_7 : f32 to vector<8x128xf32>
    %32 = arith.maximumf %30, %31 : vector<8x128xf32>
    %c16 = arith.constant 16 : index
    %33 = memref.load %arg1[%c16] : memref<21xf32, #tpu.memory_space<smem>>
    %34 = vector.broadcast %33 : f32 to vector<8x128xf32>
    %35 = arith.mulf %34, %32 : vector<8x128xf32>
    %36 = arith.addf %20, %35 : vector<8x128xf32>
    %c2 = arith.constant 2 : index
    %37 = memref.load %arg1[%c2] : memref<21xf32, #tpu.memory_space<smem>>
    %38 = vector.broadcast %37 : f32 to vector<8x128xf32>
    %39 = arith.mulf %38, %1 : vector<8x128xf32>
    %c7 = arith.constant 7 : index
    %40 = memref.load %arg1[%c7] : memref<21xf32, #tpu.memory_space<smem>>
    %41 = vector.broadcast %40 : f32 to vector<8x128xf32>
    %42 = arith.mulf %41, %3 : vector<8x128xf32>
    %43 = arith.addf %39, %42 : vector<8x128xf32>
    %c12 = arith.constant 12 : index
    %44 = memref.load %arg1[%c12] : memref<21xf32, #tpu.memory_space<smem>>
    %45 = vector.broadcast %44 : f32 to vector<8x128xf32>
    %46 = arith.addf %43, %45 : vector<8x128xf32>
    %cst_8 = arith.constant 0.000000e+00 : f32
    %47 = vector.broadcast %cst_8 : f32 to vector<8x128xf32>
    %48 = arith.maximumf %46, %47 : vector<8x128xf32>
    %c17 = arith.constant 17 : index
    %49 = memref.load %arg1[%c17] : memref<21xf32, #tpu.memory_space<smem>>
    %50 = vector.broadcast %49 : f32 to vector<8x128xf32>
    %51 = arith.mulf %50, %48 : vector<8x128xf32>
    %52 = arith.addf %36, %51 : vector<8x128xf32>
    %c3 = arith.constant 3 : index
    %53 = memref.load %arg1[%c3] : memref<21xf32, #tpu.memory_space<smem>>
    %54 = vector.broadcast %53 : f32 to vector<8x128xf32>
    %55 = arith.mulf %54, %1 : vector<8x128xf32>
    %c8 = arith.constant 8 : index
    %56 = memref.load %arg1[%c8] : memref<21xf32, #tpu.memory_space<smem>>
    %57 = vector.broadcast %56 : f32 to vector<8x128xf32>
    %58 = arith.mulf %57, %3 : vector<8x128xf32>
    %59 = arith.addf %55, %58 : vector<8x128xf32>
    %c13 = arith.constant 13 : index
    %60 = memref.load %arg1[%c13] : memref<21xf32, #tpu.memory_space<smem>>
    %61 = vector.broadcast %60 : f32 to vector<8x128xf32>
    %62 = arith.addf %59, %61 : vector<8x128xf32>
    %cst_9 = arith.constant 0.000000e+00 : f32
    %63 = vector.broadcast %cst_9 : f32 to vector<8x128xf32>
    %64 = arith.maximumf %62, %63 : vector<8x128xf32>
    %c18 = arith.constant 18 : index
    %65 = memref.load %arg1[%c18] : memref<21xf32, #tpu.memory_space<smem>>
    %66 = vector.broadcast %65 : f32 to vector<8x128xf32>
    %67 = arith.mulf %66, %64 : vector<8x128xf32>
    %68 = arith.addf %52, %67 : vector<8x128xf32>
    %c4 = arith.constant 4 : index
    %69 = memref.load %arg1[%c4] : memref<21xf32, #tpu.memory_space<smem>>
    %70 = vector.broadcast %69 : f32 to vector<8x128xf32>
    %71 = arith.mulf %70, %1 : vector<8x128xf32>
    %c9 = arith.constant 9 : index
    %72 = memref.load %arg1[%c9] : memref<21xf32, #tpu.memory_space<smem>>
    %73 = vector.broadcast %72 : f32 to vector<8x128xf32>
    %74 = arith.mulf %73, %3 : vector<8x128xf32>
    %75 = arith.addf %71, %74 : vector<8x128xf32>
    %c14 = arith.constant 14 : index
    %76 = memref.load %arg1[%c14] : memref<21xf32, #tpu.memory_space<smem>>
    %77 = vector.broadcast %76 : f32 to vector<8x128xf32>
    %78 = arith.addf %75, %77 : vector<8x128xf32>
    %cst_10 = arith.constant 0.000000e+00 : f32
    %79 = vector.broadcast %cst_10 : f32 to vector<8x128xf32>
    %80 = arith.maximumf %78, %79 : vector<8x128xf32>
    %c19 = arith.constant 19 : index
    %81 = memref.load %arg1[%c19] : memref<21xf32, #tpu.memory_space<smem>>
    %82 = vector.broadcast %81 : f32 to vector<8x128xf32>
    %83 = arith.mulf %82, %80 : vector<8x128xf32>
    %84 = arith.addf %68, %83 : vector<8x128xf32>
    %c20 = arith.constant 20 : index
    %85 = memref.load %arg1[%c20] : memref<21xf32, #tpu.memory_space<smem>>
    %86 = vector.broadcast %85 : f32 to vector<8x128xf32>
    %87 = arith.addf %84, %86 : vector<8x128xf32>
    %c0_11 = arith.constant 0 : index
    %c0_12 = arith.constant 0 : index
    %88 = vector.load %arg3[%c0_11, %c0_12] : memref<8x128xf32, #tpu.memory_space<vmem>>, vector<8x128xf32>
    tpu.vector_store %arg3[%c0_11, %c0_12], %87 {strides = array<i32>} : memref<8x128xf32, #tpu.memory_space<vmem>>, vector<8x128xf32>,
    return
  }
  func.func @transform_0(%arg0: i32) -> i32 {
    %c0_i32 = arith.constant 0 : i32
    %c0_i32_0 = arith.constant 0 : i32
    return %c0_i32 : i32
  }
  func.func @transform_1(%arg0: i32) -> (i32, i32, i32) {
    %c0_i32 = arith.constant 0 : i32
    %c0_i32_0 = arith.constant 0 : i32
    %c0_i32_1 = arith.constant 0 : i32
    return %c0_i32, %arg0, %c0_i32_0 : i32, i32, i32
  }
  func.func @transform_2(%arg0: i32) -> (i32, i32) {
    %c0_i32 = arith.constant 0 : i32
    %c0_i32_0 = arith.constant 0 : i32
    return %arg0, %c0_i32 : i32, i32
  }
}

</mosaic_0001>

<llo_original>
// kernel: tpu_custom_call.1
$region0: #{tpu_custom_call.1}
  #allocation0 [shape = 'u32[]', space=smem, size = 0x4, offset = 0x4, fixed_abs, tag = 'smem constant byte address 0x4 - core index']
  #allocation1 [shape = 'u32[72,128]{1,0:T(1,128)}', space=vmem, size = 0x9000, scoped, tag = 'internal scratch']
  %s0 = inlined_call_operand.hbm [shape: f32[21], index: 0, kind: input, shape index: {}]
  %s1 = inlined_call_operand.hbm [shape: f32[2,8,128], index: 1, kind: input, shape index: {}]
  %s2 = inlined_call_operand.hbm [shape: f32[8,128], index: 2, kind: output, shape index: {}]
  %s3 = sld [smem:[#allocation0]]
  $region26: #{tpu_custom_call.1} parent=0
    _
  %s5 = ssub.s32 1, %s3
  %s6 = scalar_select 0, %s5, %s3
  $region1: #{tpu_custom_call.1} parent=0
    #allocation2 [shape = 'u8[512]{0}', space=smem, size = 0x200, scoped, tag = 'input window, operand 0, single buffered']
    #allocation3 [shape = 's32[1]{0}', space=sflag, size = 0x4, scoped, tag = 'scoped memory for tpu_custom_call.1']
    #allocation4 [shape = 's32[1]{0}', space=sflag, size = 0x4, scoped, tag = 'scoped memory for tpu_custom_call.1']
    #allocation5 [shape = 's32[1]{0}', space=sflag, size = 0x4, scoped, tag = 'scoped memory for tpu_custom_call.1']
    #allocation6 [shape = 'u8[8192]{0}', space=vmem, size = 0x2000, scoped, tag = 'input window, operand 1, single buffered']
    #allocation7 [shape = 'u8[4096]{0}', space=vmem, size = 0x1000, scoped, tag = 'output window, operand 0, single buffered']
    %7 = vsyncpa [#allocation5], 0
    %8 = vsyncpa [#allocation3], 0
    %9 = vsyncpa [#allocation4], 0
    // Predicated region
    $region2: #{tpu_custom_call.1} parent=1 // pred_check
      _
    $region3: #{tpu_custom_call.1} parent=1 // pred_check_branch
      %11 = sbr.rel (0) target = $region5
    $region4: #{tpu_custom_call.1} parent=1 // pred_region
      %13 = vsyncadd [#allocation5], 0
      %s15 = sshll.u32 %s0, 4
      %s16 = int_to_ptr.hbm [resolvable:$true] %s15
      %18 = dma.hbm_to_smem %s16, 16, [#allocation2], [#allocation5]
    $region5: #{tpu_custom_call.1} parent=1 // pred_fallthru
      _
    // Predicated region
    $region6: #{tpu_custom_call.1} parent=1 // pred_check
      _
    $region7: #{tpu_custom_call.1} parent=1 // pred_check_branch
      %20 = sbr.rel (0) target = $region9
    $region8: #{tpu_custom_call.1} parent=1 // pred_region
      %22 = vsyncadd [#allocation3], 0
      %s23 = sshll.u32 %s1, 4
      %s24 = int_to_ptr.hbm [resolvable:$true] %s23
      %s25 = sshll.u32 [#allocation6], 4
      %s26 = int_to_ptr.vmem [resolvable:$true] %s25
      %31 = dma.hbm_to_vmem [thread:$0]  %s24, 256, %s26, [#allocation3], 128, 128, 8
    $region9: #{tpu_custom_call.1} parent=1 // pred_fallthru
      _
    // Predicated region
    $region10: #{tpu_custom_call.1} parent=1 // pred_check
      _
    $region11: #{tpu_custom_call.1} parent=1 // pred_check_branch
      %33 = sbr.rel (0) target = $region13
    $region12: #{tpu_custom_call.1} parent=1 // pred_region
      %35 = dma.done [#allocation5], 16
    $region13: #{tpu_custom_call.1} parent=1 // pred_fallthru
      _
    // Predicated region
    $region14: #{tpu_custom_call.1} parent=1 // pred_check
      _
    $region15: #{tpu_custom_call.1} parent=1 // pred_check_branch
      %37 = sbr.rel (0) target = $region17
    $region16: #{tpu_custom_call.1} parent=1 // pred_region
      %39 = dma.done [#allocation3], 256
    $region17: #{tpu_custom_call.1} parent=1 // pred_fallthru
      _
    %40 = sfence
    %v41 = vld [vmem:[#allocation6] sm:$0xff]
    %s42 = scalar_lea.vmem [#allocation6], 8
    %v43 = vld [vmem:[%s42] sm:$0xff]
    %s44 = sld [smem:[#allocation2]]
    %v45 = vstv %s44
    %v46 = vmul.f32 %v45, %v41
    %s47 = sld [smem:[#allocation2 + $0x5]]
    %v48 = vstv %s47
    %v49 = vmul.f32 %v48, %v43
    %v50 = vadd.f32 %v46, %v49
    %s51 = sld [smem:[#allocation2 + $0xa]]
    %v52 = vstv %s51
    %v53 = vadd.f32 %v50, %v52
    %v54 = vmax.f32 %v53, 0.0
    %s55 = sld [smem:[#allocation2 + $0xf]]
    %v56 = vstv %s55
    %v57 = vmul.f32 %v56, %v54
    %v58 = vadd.f32 %v57, 0.0
    %s59 = sld [smem:[#allocation2 + $0x1]]
    %v60 = vstv %s59
    %v61 = vmul.f32 %v60, %v41
    %s62 = sld [smem:[#allocation2 + $0x6]]
    %v63 = vstv %s62
    %v64 = vmul.f32 %v63, %v43
    %v65 = vadd.f32 %v61, %v64
    %s66 = sld [smem:[#allocation2 + $0xb]]
    %v67 = vstv %s66
    %v68 = vadd.f32 %v65, %v67
    %v69 = vmax.f32 %v68, 0.0
    %s70 = sld [smem:[#allocation2 + $0x10]]
    %v71 = vstv %s70
    %v72 = vmul.f32 %v71, %v69
    %v73 = vadd.f32 %v58, %v72
    %s74 = sld [smem:[#allocation2 + $0x2]]
    %v75 = vstv %s74
    %v76 = vmul.f32 %v75, %v41
    %s77 = sld [smem:[#allocation2 + $0x7]]
    %v78 = vstv %s77
    %v79 = vmul.f32 %v78, %v43
    %v80 = vadd.f32 %v76, %v79
    %s81 = sld [smem:[#allocation2 + $0xc]]
    %v82 = vstv %s81
    %v83 = vadd.f32 %v80, %v82
    %v84 = vmax.f32 %v83, 0.0
    %s85 = sld [smem:[#allocation2 + $0x11]]
    %v86 = vstv %s85
    %v87 = vmul.f32 %v86, %v84
    %v88 = vadd.f32 %v73, %v87
    %s89 = sld [smem:[#allocation2 + $0x3]]
    %v90 = vstv %s89
    %v91 = vmul.f32 %v90, %v41
    %s92 = sld [smem:[#allocation2 + $0x8]]
    %v93 = vstv %s92
    %v94 = vmul.f32 %v93, %v43
    %v95 = vadd.f32 %v91, %v94
    %s96 = sld [smem:[#allocation2 + $0xd]]
    %v97 = vstv %s96
    %v98 = vadd.f32 %v95, %v97
    %v99 = vmax.f32 %v98, 0.0
    %s100 = sld [smem:[#allocation2 + $0x12]]
    %v101 = vstv %s100
    %v102 = vmul.f32 %v101, %v99
    %v103 = vadd.f32 %v88, %v102
    %s104 = sld [smem:[#allocation2 + $0x4]]
    %v105 = vstv %s104
    %v106 = vmul.f32 %v105, %v41
    %s107 = sld [smem:[#allocation2 + $0x9]]
    %v108 = vstv %s107
    %v109 = vmul.f32 %v108, %v43
    %v110 = vadd.f32 %v106, %v109
    %s111 = sld [smem:[#allocation2 + $0xe]]
    %v112 = vstv %s111
    %v113 = vadd.f32 %v110, %v112
    %v114 = vmax.f32 %v113, 0.0
    %s115 = sld [smem:[#allocation2 + $0x13]]
    %v116 = vstv %s115
    %v117 = vmul.f32 %v116, %v114
    %v118 = vadd.f32 %v103, %v117
    %s119 = sld [smem:[#allocation2 + $0x14]]
    %v120 = vstv %s119
    %v121 = vadd.f32 %v118, %v120
    %122 = vst [vmem:[#allocation7] sm:$0xff] %v121
    // Predicated region
    $region18: #{tpu_custom_call.1} parent=1 // pred_check
      _
    $region19: #{tpu_custom_call.1} parent=1 // pred_check_branch
      %124 = sbr.rel (0) target = $region21
    $region20: #{tpu_custom_call.1} parent=1 // pred_region
      %126 = vsyncadd [#allocation4], 0
      %s128 = sshll.u32 [#allocation7], 4
      %s129 = int_to_ptr.vmem [resolvable:$true] %s128
      %s130 = sshll.u32 %s2, 4
      %s131 = int_to_ptr.hbm [resolvable:$true] %s130
      %133 = dma.vmem_to_hbm [thread:$0]  %s129, 128, %s131, [#allocation4]
    $region21: #{tpu_custom_call.1} parent=1 // pred_fallthru
      _
    // Predicated region
    $region22: #{tpu_custom_call.1} parent=1 // pred_check
      _
    $region23: #{tpu_custom_call.1} parent=1 // pred_check_branch
      %135 = sbr.rel (0) target = $region25
    $region24: #{tpu_custom_call.1} parent=1 // pred_region
      %137 = dma.done [#allocation4], 128
    $region25: #{tpu_custom_call.1} parent=1 // pred_fallthru
      _
    %138 = vsyncpa [#allocation3], 1
    %139 = vsyncpa [#allocation4], 1
    %140 = vsyncpa [#allocation5], 1

</llo_original>
